<compile_context>
chip_gen: v5e
topology: v5e:2x2
jax: 0.10.0
libtpu: 0.0.40
codegen_flags: <defaults>
</compile_context>

<pallas_src>
import jax
import jax.numpy as jnp
from jax.experimental import pallas as pl
from jax.experimental.pallas import tpu as pltpu

_PACK = 4  # packed output rows: [value, action_log_prob, entropy, action(as f32)]


def _policy_heads_kernel(feat_ref, w_ref, b_ref, out_ref):
    feat = feat_ref[...]                                   # (TB, H)
    w = w_ref[...]                                         # (A+1, H)

    # One fused MXU matmul for both heads, batch on the lane axis:
    #   fused[r, t] = sum_h w[r, h] * feat[t, h]  ->  (A+1, TB)
    fused = jax.lax.dot_general(
        w, feat,
        dimension_numbers=(((1,), (1,)), ((), ())),
        preferred_element_type=jnp.float32) + b_ref[...]   # bias (A+1,1) bcast on lanes

    A = fused.shape[0] - 1
    TB = fused.shape[1]
    logits = fused[:A, :]                                  # (A, TB)  actor logits
    value = fused[A:A + 1, :]                              # (1, TB)  critic value

    # --- Categorical distribution math (f32, lane-dense over the batch) ----------
    m = jnp.max(logits, axis=0, keepdims=True)             # (1, TB)
    z = logits - m
    e = jnp.exp(z)                                         # single EUP pass
    sum_e = jnp.sum(e, axis=0, keepdims=True)              # (1, TB)
    log_sum = jnp.log(sum_e)                               # (1, TB)

    # deterministic action = mode = first argmax (matches torch.argmax tie-break)
    row = jax.lax.broadcasted_iota(jnp.int32, (A, TB), 0)
    action = jnp.min(jnp.where(logits == m, row, A),
                     axis=0, keepdims=True)                # (1, TB) i32

    # log_probs(action): at the argmax z == 0, so log_softmax(action) == -log(sum_e)
    alp = -log_sum                                         # (1, TB)

    # per-sample entropy: -sum p*logp == log(sum_e) - sum(e*z)/sum_e (exact division)
    ent = log_sum - jnp.sum(e * z, axis=0, keepdims=True) / sum_e

    # pack rows [value, log_prob, entropy, action(float)] -> lane-dense (4, TB)
    act_f = action.astype(jnp.float32)                     # exact for action < 2^24
    prow = jax.lax.broadcasted_iota(jnp.int32, (_PACK, TB), 0)
    out_ref[...] = jnp.where(prow == 0, value,
                   jnp.where(prow == 1, alp,
                   jnp.where(prow == 2, ent, act_f)))


def _pick_batch_tile(B, H, itemsize):
    """Pick the batch tile TB (lane axis of the output).

    Small batches run as one full-extent block; larger batches get ~1 MiB feature
    tiles (multiple of 128) with a ragged last block, and at least 2 grid steps so
    v7x's two TensorCores both get work.
    """
    if B <= 256:
        return B
    target_bytes = 1 << 20                                    # ~1 MiB feature tile
    tb = max(128, (target_bytes // max(H * itemsize, 1)) // 128 * 128)
    half = -(-B // 2)                                         # ceil(B/2)
    half = -(-half // 128) * 128                              # round up to 128
    tb = min(tb, half, 8192)
    return max(tb, 128)


@jax.jit
def policy_exp_attention_heads(features, wa, ba, wc, bc):
    """Fused actor/critic heads.

    features: [B, H]; wa: [H, A]; ba: [1, A]; wc: [H, 1]; bc: [1, 1].
    Returns (value [B,1] f32, action [B,1] i32, action_log_probs [B,1] f32,
             entropy [B,1] f32).
    """
    B, H = features.shape
    A = wa.shape[1]

    # host-side packing: one weight / bias for both heads, rows [0:A) actor, row A critic
    w = jnp.concatenate([wa, wc], axis=1).T.astype(features.dtype)   # (A+1, H)
    b = jnp.concatenate([ba, bc], axis=1).T.astype(jnp.float32)      # (A+1, 1)

    itemsize = jnp.dtype(features.dtype).itemsize
    TB = _pick_batch_tile(B, H, itemsize)
    grid = (pl.cdiv(B, TB),)

    vmem_est = (2 * TB * H * itemsize            # double-buffered feature tiles
                + 2 * _PACK * TB * 4             # double-buffered output tiles
                + (A + 1) * (H * itemsize + 4)   # resident packed weight + bias
                + (8 << 20))                     # intermediates / headroom
    vmem_limit = int(min(max(vmem_est, 16 << 20), 48 << 20))  # stay well under v7x 64 MiB

    packed = pl.pallas_call(
        _policy_heads_kernel,
        out_shape=jax.ShapeDtypeStruct((_PACK, B), jnp.float32),
        grid=grid,
        in_specs=[
            pl.BlockSpec((TB, H), lambda i: (i, 0)),        # features: tiled over batch
            pl.BlockSpec((A + 1, H), lambda i: (0, 0)),     # packed weight: VMEM-resident
            pl.BlockSpec((A + 1, 1), lambda i: (0, 0)),     # packed bias: VMEM-resident
        ],
        out_specs=pl.BlockSpec((_PACK, TB), lambda i: (0, i)),  # lane-dense (4, B) slab
        compiler_params=pltpu.CompilerParams(
            dimension_semantics=("parallel",),              # megacore split on v7x
            vmem_limit_bytes=vmem_limit,
        ),
    )(features, w, b)

    value = packed[0, :][:, None]
    action_log_probs = packed[1, :][:, None]
    entropy = packed[2, :][:, None]
    action = jnp.round(packed[3, :]).astype(jnp.int32)[:, None]
    return value, action, action_log_probs, entropy


def _orthogonal(key, shape, gain=1.0):
    """torch.nn.init.orthogonal_ equivalent (deterministic given key)."""
    rows, cols = shape
    n = max(rows, cols)
    a = jax.random.normal(key, (n, n), dtype=jnp.float32)
    q, r = jnp.linalg.qr(a)
    q = q * jnp.sign(jnp.diagonal(r))
    return (gain * q[:rows, :cols]).astype(jnp.float32)


if __name__ == "__main__":
    # Small shapes consistent with the module: net.output_size = 32, dim_actions = 4.
    B, H, A = 8, 32, 4
    key = jax.random.PRNGKey(0)
    k_feat, k_wa, k_wc = jax.random.split(key, 3)

    features = jax.random.normal(k_feat, (B, H), dtype=jnp.float32)

    # CategoricalNet linear: torch weight shape (A, H), orthogonal(gain=0.01), bias=0.
    wa_torch = _orthogonal(k_wa, (A, H), gain=0.01)
    wa = wa_torch.T                                    # stored as [H, A]
    ba = jnp.zeros((1, A), dtype=jnp.float32)

    # CriticHead linear: torch weight shape (1, H), orthogonal(gain=1.0), bias=0.
    wc_torch = _orthogonal(k_wc, (1, H), gain=1.0)
    wc = wc_torch.T                                    # stored as [H, 1]
    bc = jnp.zeros((1, 1), dtype=jnp.float32)

    value, action, action_log_probs, entropy = policy_exp_attention_heads(
        features, wa, ba, wc, bc)
    jax.block_until_ready((value, action, action_log_probs, entropy))

    # Lightweight reference check in plain JAX.
    logits_ref = features @ wa + ba
    value_ref = features @ wc + bc
    logp_ref = jax.nn.log_softmax(logits_ref, axis=-1)
    act_ref = jnp.argmax(logits_ref, axis=-1, keepdims=True)
    alp_ref = jnp.take_along_axis(logp_ref, act_ref, axis=-1)
    ent_ref = -jnp.sum(jnp.exp(logp_ref) * logp_ref, axis=-1, keepdims=True)

    assert jnp.allclose(value, value_ref, atol=1e-4), "value mismatch"
    assert jnp.all(action == act_ref.astype(jnp.int32)), "action mismatch"
    assert jnp.allclose(action_log_probs, alp_ref, atol=1e-4), "log_prob mismatch"
    assert jnp.allclose(entropy, ent_ref, atol=1e-4), "entropy mismatch"

    # TODO(synk): the `net` backbone and the stochastic sampling path
    # (distribution.sample()) are external / RNG-driven and not part of this kernel;
    # for the per-step rollout (tiny B ~ num_envs) this head should be fused into the
    # backbone's final-linear pallas_call rather than launched standalone.
    print("KERNEL_OK")
</pallas_src>

<mosaic_0001>
module attributes {stable_mosaic.version = 11 : i64} {
  func.func @_policy_heads_kernel(%arg0: i32, %arg1: memref<8x32xf32, #tpu.memory_space<vmem>>, %arg2: memref<5x32xf32, #tpu.memory_space<vmem>>, %arg3: memref<5x1xf32, #tpu.memory_space<vmem>>, %arg4: memref<4x8xf32, #tpu.memory_space<vmem>>) attributes {dimension_semantics = [#tpu.dimension_semantics<parallel>], iteration_bounds = array<i64: 1>, scalar_prefetch = 0 : i64, scratch_operands = 0 : i64, tpu.core_type = #tpu.core_type<tc>, window_params = [{transform_indices = @transform_0, window_bounds = array<i64: 8, 32>}, {pipeline_mode = #tpu.pipeline_mode<synchronous>, transform_indices = @transform_1, window_bounds = array<i64: 5, 32>}, {pipeline_mode = #tpu.pipeline_mode<synchronous>, transform_indices = @transform_2, window_bounds = array<i64: 5, 1>}, {transform_indices = @transform_3, window_bounds = array<i64: 4, 8>}]} {
    %c0 = arith.constant 0 : index
    %c0_0 = arith.constant 0 : index
    %0 = vector.load %arg1[%c0, %c0_0] : memref<8x32xf32, #tpu.memory_space<vmem>>, vector<8x32xf32>
    %c0_1 = arith.constant 0 : index
    %c0_2 = arith.constant 0 : index
    %1 = vector.load %arg2[%c0_1, %c0_2] : memref<5x32xf32, #tpu.memory_space<vmem>>, vector<5x32xf32>
    %cst = arith.constant dense<0.000000e+00> : vector<5x8xf32>
    %2 = tpu.matmul %1, %0, %cst {dimension_numbers = #tpu.dot_dimension_numbers<[1], [1], [0], [0], [0, 0, 1, 0], [], []>} : vector<5x32xf32>, vector<8x32xf32>, vector<5x8xf32> -> vector<5x8xf32>
    %c0_3 = arith.constant 0 : index
    %c0_4 = arith.constant 0 : index
    %3 = vector.load %arg3[%c0_3, %c0_4] : memref<5x1xf32, #tpu.memory_space<vmem>>, vector<5x1xf32>
    %4 = vector.broadcast %3 : vector<5x1xf32> to vector<5x8xf32>
    %5 = arith.addf %2, %4 : vector<5x8xf32>
    %6 = vector.extract_strided_slice %5 {offsets = [0, 0], sizes = [4, 8], strides = [1, 1]} : vector<5x8xf32> to vector<4x8xf32>
    %7 = vector.extract_strided_slice %5 {offsets = [4, 0], sizes = [1, 8], strides = [1, 1]} : vector<5x8xf32> to vector<1x8xf32>
    %cst_5 = arith.constant dense<0xFF800000> : vector<8xf32>
    %8 = vector.multi_reduction <maximumf>, %6, %cst_5 [0] : vector<4x8xf32> to vector<8xf32>
    %9 = vector.shape_cast %8 : vector<8xf32> to vector<1x8xf32>
    %10 = vector.broadcast %9 : vector<1x8xf32> to vector<4x8xf32>
    %11 = arith.subf %6, %10 : vector<4x8xf32>
    %12 = math.exp %11 : vector<4x8xf32>
    %cst_6 = arith.constant dense<0.000000e+00> : vector<8xf32>
    %13 = vector.multi_reduction <add>, %12, %cst_6 [0] : vector<4x8xf32> to vector<8xf32>
    %14 = vector.shape_cast %13 : vector<8xf32> to vector<1x8xf32>
    %15 = math.log %14 : vector<1x8xf32>
    %16 = tpu.iota {dimensions = array<i32: 0>} : vector<4x8xi32>
    %17 = vector.broadcast %9 : vector<1x8xf32> to vector<4x8xf32>
    %18 = arith.cmpf oeq, %6, %17 : vector<4x8xf32>
    %c4_i32 = arith.constant 4 : i32
    %19 = vector.broadcast %c4_i32 : i32 to vector<4x8xi32>
    %20 = arith.select %18, %16, %19 : vector<4x8xi1>, vector<4x8xi32>
    %cst_7 = arith.constant dense<2147483647> : vector<8xi32>
    %21 = vector.multi_reduction <minsi>, %20, %cst_7 [0] : vector<4x8xi32> to vector<8xi32>
    %22 = vector.shape_cast %21 : vector<8xi32> to vector<1x8xi32>
    %cst_8 = arith.constant 0.000000e+00 : f32
    %23 = vector.broadcast %cst_8 : f32 to vector<1x8xf32>
    %24 = arith.subf %23, %15 : vector<1x8xf32>
    %25 = arith.mulf %12, %11 : vector<4x8xf32>
    %cst_9 = arith.constant dense<0.000000e+00> : vector<8xf32>
    %26 = vector.multi_reduction <add>, %25, %cst_9 [0] : vector<4x8xf32> to vector<8xf32>
    %27 = vector.shape_cast %26 : vector<8xf32> to vector<1x8xf32>
    %28 = arith.divf %27, %14 : vector<1x8xf32>
    %29 = arith.subf %15, %28 : vector<1x8xf32>
    %30 = arith.sitofp %22 : vector<1x8xi32> to vector<1x8xf32>
    %31 = tpu.iota {dimensions = array<i32: 0>} : vector<4x8xi32>
    %c0_i32 = arith.constant 0 : i32
    %32 = vector.broadcast %c0_i32 : i32 to vector<4x8xi32>
    %33 = arith.cmpi eq, %31, %32 : vector<4x8xi32>
    %c1_i32 = arith.constant 1 : i32
    %34 = vector.broadcast %c1_i32 : i32 to vector<4x8xi32>
    %35 = arith.cmpi eq, %31, %34 : vector<4x8xi32>
    %c2_i32 = arith.constant 2 : i32
    %36 = vector.broadcast %c2_i32 : i32 to vector<4x8xi32>
    %37 = arith.cmpi eq, %31, %36 : vector<4x8xi32>
    %38 = vector.shape_cast %29 : vector<1x8xf32> to vector<1x8xf32>
    %39 = vector.broadcast %38 : vector<1x8xf32> to vector<4x8xf32>
    %40 = vector.shape_cast %30 : vector<1x8xf32> to vector<1x8xf32>
    %41 = vector.broadcast %40 : vector<1x8xf32> to vector<4x8xf32>
    %42 = arith.select %37, %39, %41 : vector<4x8xi1>, vector<4x8xf32>
    %43 = vector.shape_cast %24 : vector<1x8xf32> to vector<1x8xf32>
    %44 = vector.broadcast %43 : vector<1x8xf32> to vector<4x8xf32>
    %45 = arith.select %35, %44, %42 : vector<4x8xi1>, vector<4x8xf32>
    %46 = vector.shape_cast %7 : vector<1x8xf32> to vector<1x8xf32>
    %47 = vector.broadcast %46 : vector<1x8xf32> to vector<4x8xf32>
    %48 = arith.select %33, %47, %45 : vector<4x8xi1>, vector<4x8xf32>
    %c0_10 = arith.constant 0 : index
    %c0_11 = arith.constant 0 : index
    %49 = vector.load %arg4[%c0_10, %c0_11] : memref<4x8xf32, #tpu.memory_space<vmem>>, vector<4x8xf32>
    tpu.vector_store %arg4[%c0_10, %c0_11], %48 {strides = array<i32>} : memref<4x8xf32, #tpu.memory_space<vmem>>, vector<4x8xf32>,
    return
  }
  func.func @transform_0(%arg0: i32) -> (i32, i32) {
    %c0_i32 = arith.constant 0 : i32
    %c0_i32_0 = arith.constant 0 : i32
    return %arg0, %c0_i32 : i32, i32
  }
  func.func @transform_1(%arg0: i32) -> (i32, i32) {
    %c0_i32 = arith.constant 0 : i32
    %c0_i32_0 = arith.constant 0 : i32
    %c0_i32_1 = arith.constant 0 : i32
    return %c0_i32, %c0_i32_0 : i32, i32
  }
  func.func @transform_2(%arg0: i32) -> (i32, i32) {
    %c0_i32 = arith.constant 0 : i32
    %c0_i32_0 = arith.constant 0 : i32
    %c0_i32_1 = arith.constant 0 : i32
    return %c0_i32, %c0_i32_0 : i32, i32
  }
  func.func @transform_3(%arg0: i32) -> (i32, i32) {
    %c0_i32 = arith.constant 0 : i32
    %c0_i32_0 = arith.constant 0 : i32
    return %c0_i32, %arg0 : i32, i32
  }
}

</mosaic_0001>

<llo_original>
// kernel: policy_exp_attention_heads.1
$region0: #{policy_exp_attention_heads.1}
  #allocation0 [shape = 'u32[]', space=smem, size = 0x4, offset = 0x4, fixed_abs, tag = 'smem constant byte address 0x4 - core index']
  #allocation1 [shape = 'u32[72,128]{1,0:T(1,128)}', space=vmem, size = 0x9000, scoped, tag = 'internal scratch']
  %s0 = inlined_call_operand.vmem [shape: f32[8,32], index: 0, kind: input, shape index: {}]
  %s1 = inlined_call_operand.vmem [shape: f32[5,32], index: 1, kind: input, shape index: {}]
  %s2 = inlined_call_operand.vmem [shape: f32[5,1], index: 2, kind: input, shape index: {}]
  %s3 = inlined_call_operand.vmem [shape: f32[4,8], index: 3, kind: output, shape index: {}]
  %s4 = sld [smem:[#allocation0]]
  $region22: #{policy_exp_attention_heads.1} parent=0
    _
  %s6 = ssub.s32 1, %s4
  %s7 = scalar_select 0, %s6, %s4
  // Predicated region
  $region2: #{policy_exp_attention_heads.1} parent=0 // pred_check
    _
  $region3: #{policy_exp_attention_heads.1} parent=0 // pred_check_branch
    %9 = sbr.rel (0) target = $region5
  $region4: #{policy_exp_attention_heads.1} parent=0 // pred_region
    _
  $region5: #{policy_exp_attention_heads.1} parent=0 // pred_fallthru
    _
  // Predicated region
  $region6: #{policy_exp_attention_heads.1} parent=0 // pred_check
    _
  $region7: #{policy_exp_attention_heads.1} parent=0 // pred_check_branch
    %11 = sbr.rel (0) target = $region9
  $region8: #{policy_exp_attention_heads.1} parent=0 // pred_region
    _
  $region9: #{policy_exp_attention_heads.1} parent=0 // pred_fallthru
    _
  // Predicated region
  $region10: #{policy_exp_attention_heads.1} parent=0 // pred_check
    _
  $region11: #{policy_exp_attention_heads.1} parent=0 // pred_check_branch
    %13 = sbr.rel (0) target = $region13
  $region12: #{policy_exp_attention_heads.1} parent=0 // pred_region
    _
  $region13: #{policy_exp_attention_heads.1} parent=0 // pred_fallthru
    _
  %v14 = vld [vmem:[%s0] sm:$0xff]
  %v15 = vld [vmem:[%s1] sm:$0x1f]
  %v16 = vld [vmem:[%s2] sm:$0x1f]
  %18 = vset.pattern.permute.xlu0 0
  %19 = vperm.xlu0 %18, %v16
  %v20 = vpop.permute.xlu0 %19
  %vm22 = vcmask 261120
  %v24 = vsel %vm22, %v15, 0
  %v27 = vsel %vm22, %v14, 0
  %29 = vmatpush.xpose.msra.mxu0 0.0
  %30 = vmatpush.xpose.msra.mxu0 0.0
  %31 = vmatpush.xpose.msra.mxu0 0.0
  %32 = vmatpush.xpose.msra.mxu0 0.0
  %33 = vmatpush.xpose.msra.mxu0 0.0
  %34 = vmatpush.xpose.msra.mxu0 0.0
  %35 = vmatpush.xpose.msra.mxu0 0.0
  %36 = vmatpush.xpose.msra.mxu0 0.0
  %37 = vmatpush.xpose.msra.mxu0 0.0
  %38 = vmatpush.xpose.msra.mxu0 0.0
  %39 = vmatpush.xpose.msra.mxu0 0.0
  %40 = vmatpush.xpose.msra.mxu0 0.0
  %41 = vmatpush.xpose.msra.mxu0 0.0
  %42 = vmatpush.xpose.msra.mxu0 0.0
  %43 = vmatpush.xpose.msra.mxu0 0.0
  %44 = vmatpush.xpose.msra.mxu0 %v27
  %45 = vmatmul.f32.gmra.mxu0 %v24
  %v46 = vpop.f32.mrf.mxu0
  %v47 = vadd.f32 %v20, %v46
  %48 = vdwg.mxu0
  %vm49 = vcmask 60416
  %v50 = vsel %vm49, %v47, -inf
  %v51 = vrot.slane %v50, 4
  %v52 = vmax.f32 %v50, %v51
  %v53 = vrot.slane %v52, 2
  %v54 = vmax.f32 %v52, %v53
  %v55 = vrot.slane %v54, 1
  %v56 = vmax.f32 %v54, %v55
  %v57 = vsub.f32 %v47, %v56
  %v58 = vmul.f32 %v57, 1.442695
  %v59 = vpow.pop %v58
  %v60 = vsel %vm49, %v59, 0.0
  %v61 = vrot.slane %v60, 4
  %v62 = vadd.f32 %v60, %v61
  %v63 = vrot.slane %v62, 2
  %v64 = vadd.f32 %v62, %v63
  %v65 = vrot.slane %v64, 1
  %v66 = vadd.f32 %v64, %v65
  %v67 = vlog2.pop %v66
  %v68 = vmul.f32 %v67, 0.6931472
  %v69 = vlaneseq
  %v70 = vshrl.u32 %v69, 7
  %vm71 = vcmp.eq.f32.partialorder %v47, %v56
  %v72 = vsel %vm71, %v70, 4
  %v73 = vsel %vm49, %v72, 2147483647
  %v74 = vrot.slane %v73, 4
  %vm75 = vcmp.lt.s32.totalorder %v73, %v74
  %v76 = vsel %vm75, %v73, %v74
  %v77 = vrot.slane %v76, 2
  %vm78 = vcmp.lt.s32.totalorder %v76, %v77
  %v79 = vsel %vm78, %v76, %v77
  %v80 = vrot.slane %v79, 1
  %vm81 = vcmp.lt.s32.totalorder %v79, %v80
  %v82 = vsel %vm81, %v79, %v80
  %v83 = vsub.f32 0.0, %v68
  %v84 = vmul.f32 %v59, %v57
  %v85 = vsel %vm49, %v84, 0.0
  %v86 = vrot.slane %v85, 4
  %v87 = vadd.f32 %v85, %v86
  %v88 = vrot.slane %v87, 2
  %v89 = vadd.f32 %v87, %v88
  %v90 = vrot.slane %v89, 1
  %v91 = vadd.f32 %v89, %v90
  %v92 = vrcp.pop %v66
  %v93 = vmul.f32 %v66, %v92
  %v94 = vsub.f32 1.0, %v93
  %v95 = vmul.f32 %v92, %v94
  %v96 = vadd.f32 %v92, %v95
  %vm97 = vweird.f32 %v66
  %vm98 = vweird.f32 %v92
  %vm99 = vmor %vm97, %vm98
  %v100 = vsel %vm99, %v92, %v96
  %v101 = vand.u32 2147483647, %v66
  %vm102 = vcmp.eq.f32.partialorder %v101, 8.507059e+37
  %v103 = vand.u32 %v66, 2147483648
  %v104 = vor.u32 1.1754944e-38, %v103
  %v105 = vsel %vm102, %v104, %v100
  %v106 = vmul.f32 %v91, %v105
  %v107 = vsub.f32 %v68, %v106
  %v108 = vcvt.s32.f32 %v82
  %vm109 = vcmp.eq.s32.totalorder %v70, 0
  %vm110 = vcmp.eq.s32.totalorder %v70, 1
  %vm111 = vcmp.eq.s32.totalorder %v70, 2
  %v112 = vsel %vm111, %v107, %v108
  %v113 = vsel %vm110, %v83, %v112
  %v114 = vperm.slane %v47, 4
  %v115 = vsel %vm109, %v114, %v113
  %116 = vst.msk [vmem:[%s3] sm:$0xf] %vm49, %v115
  // Predicated region
  $region14: #{policy_exp_attention_heads.1} parent=0 // pred_check
    _
  $region15: #{policy_exp_attention_heads.1} parent=0 // pred_check_branch
    %118 = sbr.rel (0) target = $region17
  $region16: #{policy_exp_attention_heads.1} parent=0 // pred_region
    _
  $region17: #{policy_exp_attention_heads.1} parent=0 // pred_fallthru
    _
  // Predicated region
  $region18: #{policy_exp_attention_heads.1} parent=0 // pred_check
    _
  $region19: #{policy_exp_attention_heads.1} parent=0 // pred_check_branch
    %120 = sbr.rel (0) target = $region21
  $region20: #{policy_exp_attention_heads.1} parent=0 // pred_region
    _
  $region21: #{policy_exp_attention_heads.1} parent=0 // pred_fallthru
    _

</llo_original>
